<compile_context>
chip_gen: v7x
topology: tpu7x:2x2x1
jax: 0.10.0
libtpu: 0.0.40
codegen_flags: <defaults>
</compile_context>

<pallas_src>
import numpy as np
import jax
import jax.numpy as jnp
from jax import lax
from jax.experimental import pallas as pl
from jax.experimental.pallas import tpu as pltpu

# Deterministic "weights" from EdgeLoss.__init__: k = [0.05,0.25,0.4,0.25,0.05],
# kernel = outer(k, k), repeated per channel (identical per channel).
_K1D = [0.05, 0.25, 0.4, 0.25, 0.05]
_K2D = [[ki * kj for kj in _K1D] for ki in _K1D]
_EPS = 1e-3  # CharbonnierLoss eps


# ----------------------------- in-kernel helpers -----------------------------
def _make_shifts(h, w):
    """Build clamped-shift ops for a (TB, H, W) f32 value.

    y[..., j] = v[..., clamp(j + d, 0, size-1)]  (replicate padding).
    Uses pltpu.roll (XLU rotate) + edge fix when the dims are vreg-aligned,
    otherwise the slice+edge-replicate concat formulation.
    """
    lane_roll = (w % 128 == 0)
    sublane_roll = (h % 8 == 0) and (w % 128 == 0)

    def shift_w(v, d):
        if d == 0:
            return v
        if lane_roll:
            r = pltpu.roll(v, shift=(-d) % w, axis=2)
            wi = lax.broadcasted_iota(jnp.int32, (1, w), 1)
            if d > 0:
                return jnp.where(wi >= w - d, v[..., w - 1:w], r)
            return jnp.where(wi < -d, v[..., 0:1], r)
        if d > 0:
            return jnp.concatenate([v[..., d:]] + [v[..., w - 1:w]] * d, axis=-1)
        return jnp.concatenate([v[..., 0:1]] * (-d) + [v[..., :d]], axis=-1)

    def shift_h(v, d):
        if d == 0:
            return v
        if sublane_roll:
            r = pltpu.roll(v, shift=(-d) % h, axis=1)
            hi = lax.broadcasted_iota(jnp.int32, (h, 1), 0)
            if d > 0:
                return jnp.where(hi >= h - d, v[..., h - 1:h, :], r)
            return jnp.where(hi < -d, v[..., 0:1, :], r)
        if d > 0:
            return jnp.concatenate([v[..., d:, :]] + [v[..., h - 1:h, :]] * d,
                                   axis=-2)
        return jnp.concatenate([v[..., 0:1, :]] * (-d) + [v[..., :d, :]], axis=-2)

    return shift_w, shift_h


def _blur5(v, shift_w, shift_h):
    """Separable 5x5 gaussian blur with replicate padding (k symmetric)."""
    t = (0.4 * v
         + 0.25 * (shift_w(v, -1) + shift_w(v, 1))
         + 0.05 * (shift_w(v, -2) + shift_w(v, 2)))
    t = (0.4 * t
         + 0.25 * (shift_h(t, -1) + shift_h(t, 1))
         + 0.05 * (shift_h(t, -2) + shift_h(t, 2)))
    return t


def _make_kernel(b_valid, tb, need_mask):
    def kernel(x_ref, y_ref, out_ref):
        _, h, w = x_ref.shape
        shift_w, shift_h = _make_shifts(h, w)

        # Linearity fusion: laplacian(x) - laplacian(y) == laplacian(x - y),
        # so x/y are consumed immediately into one f32 difference plane.
        d = x_ref[...].astype(jnp.float32) - y_ref[...].astype(jnp.float32)

        # even-even downsample mask (folded with the *4), built once per step.
        hi = lax.broadcasted_iota(jnp.int32, (h, w), 0)
        wi = lax.broadcasted_iota(jnp.int32, (h, w), 1)
        mask4 = jnp.where(((hi & 1) | (wi & 1)) == 0,
                          jnp.float32(4.0), jnp.float32(0.0))

        g = _blur5(d, shift_w, shift_h)
        lap = d - _blur5(mask4[None, :, :] * g, shift_w, shift_h)

        # Charbonnier per element.
        c = jnp.sqrt(lap * lap + jnp.float32(_EPS * _EPS))

        if need_mask:
            # Zero the padded (invalid) planes of the ragged last block exactly.
            plane = (pl.program_id(0) * tb
                     + lax.broadcasted_iota(jnp.int32, (tb, 1, 1), 0))
            c = jnp.where(plane < b_valid, c, jnp.float32(0.0))

        # Reduce only the TB axis (elementwise VPU adds across vregs); the tiny
        # cross-lane sum happens on the host, keeping the XLU free.
        out_ref[...] = jnp.sum(c, axis=0, keepdims=True)

    return kernel


# --------------------------------- wrapper -----------------------------------
def _pick_tb(b, h, w, in_dtype_bytes):
    """Largest TB whose per-step working set fits a ~8 MiB budget.

    Per plane: 2 inputs x 2 pipeline buffers x dtype bytes + ~6 live f32
    intermediates of the fused laplacian.  8 MiB + 48 MiB vmem_limit leaves
    plenty of headroom even on v7x (64 MiB VMEM/TC).
    """
    per_plane = (4 * in_dtype_bytes + 6 * 4) * h * w
    budget = 8 << 20
    max_tb = max(1, budget // per_plane)
    tb = int(min(max_tb, b))
    if b >= 2:
        # Keep at least 2 grid steps so both v7x TensorCores get work
        # (grid axis is "parallel").
        tb = min(tb, (b + 1) // 2)
    return max(1, tb)


def _as_kernel_dtype(a):
    # Keep bf16/f32 as-is (halves DMA bytes for bf16); cast anything else to f32.
    if a.dtype == jnp.float32 or a.dtype == jnp.bfloat16:
        return a
    return a.astype(jnp.float32)


def edge_loss(x, y):
    """EdgeLoss.forward(x, y) for NCHW inputs. Returns a scalar."""
    n, c, h, w = x.shape
    b = n * c
    xr = _as_kernel_dtype(x).reshape(b, h, w)
    yr = _as_kernel_dtype(y).reshape(b, h, w)

    tb = _pick_tb(b, h, w, xr.dtype.itemsize)
    nblk = -(-b // tb)
    b_pad = nblk * tb
    if b_pad != b:
        pad = ((0, b_pad - b), (0, 0), (0, 0))
        xr = jnp.pad(xr, pad)
        yr = jnp.pad(yr, pad)

    kernel = _make_kernel(b, tb, b_pad != b)

    out = pl.pallas_call(
        kernel,
        out_shape=jax.ShapeDtypeStruct((nblk, h, w), jnp.float32),
        grid_spec=pltpu.PrefetchScalarGridSpec(
            num_scalar_prefetch=0,
            grid=(nblk,),
            in_specs=[
                pl.BlockSpec((tb, h, w), lambda i: (i, 0, 0)),
                pl.BlockSpec((tb, h, w), lambda i: (i, 0, 0)),
            ],
            out_specs=pl.BlockSpec((1, h, w), lambda i: (i, 0, 0)),
        ),
        compiler_params=pltpu.CompilerParams(
            dimension_semantics=("parallel",),      # independent per-block partials
            vmem_limit_bytes=48 * 1024 * 1024,      # safe on v7x's 64 MiB VMEM
        ),
    )(xr, yr)

    # Tiny final reduction + mean normalization in plain JAX.
    return jnp.sum(out) / jnp.float32(b * h * w)


# ---------------- pure-JAX reference (mirrors the PyTorch ops) ----------------
def _ref_conv_gauss(img):
    nb, c, h, w = img.shape
    k2d = jnp.asarray(_K2D, jnp.float32)
    wk = jnp.broadcast_to(k2d[None, None], (c, 1, 5, 5))
    padded = jnp.pad(img, ((0, 0), (0, 0), (2, 2), (2, 2)), mode="edge")
    return lax.conv_general_dilated(
        padded, wk, window_strides=(1, 1), padding="VALID",
        dimension_numbers=("NCHW", "OIHW", "NCHW"), feature_group_count=c)


def _ref_laplacian(img):
    filtered = _ref_conv_gauss(img)
    down = filtered[:, :, ::2, ::2]
    new_filter = jnp.zeros_like(filtered)
    new_filter = new_filter.at[:, :, ::2, ::2].set(down * 4.0)
    filtered = _ref_conv_gauss(new_filter)
    return img - filtered


def _ref_edge_loss(x, y):
    dx = _ref_laplacian(x.astype(jnp.float32))
    dy = _ref_laplacian(y.astype(jnp.float32))
    diff = dx - dy
    return jnp.mean(jnp.sqrt(diff * diff + _EPS * _EPS))


if __name__ == "__main__":
    key = jax.random.PRNGKey(0)

    # EdgeLoss kernel is built for 3 channels (RGB images).
    # First shape: even B (megacore split, no padding); second: ragged B
    # (exercises the pad + in-kernel validity mask path).
    for shape in [(2, 3, 16, 16), (1, 3, 20, 36)]:
        key, kx, ky = jax.random.split(key, 3)
        x = jax.random.normal(kx, shape, dtype=jnp.float32)
        y = jax.random.normal(ky, shape, dtype=jnp.float32)

        out = jax.block_until_ready(edge_loss(x, y))
        ref = jax.block_until_ready(_ref_edge_loss(x, y))
        np.testing.assert_allclose(np.asarray(out), np.asarray(ref),
                                   rtol=5e-5, atol=1e-6)

    print("KERNEL_OK")
</pallas_src>

<mosaic_0001>
module attributes {stable_mosaic.version = 11 : i64} {
  func.func @kernel(%arg0: i32, %arg1: memref<3x16x16xf32, #tpu.memory_space<vmem>>, %arg2: memref<3x16x16xf32, #tpu.memory_space<vmem>>, %arg3: memref<1x16x16xf32, #tpu.memory_space<vmem>>) attributes {dimension_semantics = [#tpu.dimension_semantics<parallel>], iteration_bounds = array<i64: 2>, scalar_prefetch = 0 : i64, scratch_operands = 0 : i64, tpu.core_type = #tpu.core_type<tc>, window_params = [{transform_indices = @transform_0, window_bounds = array<i64: 3, 16, 16>}, {transform_indices = @transform_1, window_bounds = array<i64: 3, 16, 16>}, {transform_indices = @transform_2, window_bounds = array<i64: 1, 16, 16>}]} {
    %c0 = arith.constant 0 : index
    %c0_0 = arith.constant 0 : index
    %c0_1 = arith.constant 0 : index
    %0 = vector.load %arg1[%c0, %c0_0, %c0_1] : memref<3x16x16xf32, #tpu.memory_space<vmem>>, vector<3x16x16xf32>
    %c0_2 = arith.constant 0 : index
    %c0_3 = arith.constant 0 : index
    %c0_4 = arith.constant 0 : index
    %1 = vector.load %arg2[%c0_2, %c0_3, %c0_4] : memref<3x16x16xf32, #tpu.memory_space<vmem>>, vector<3x16x16xf32>
    %2 = arith.subf %0, %1 : vector<3x16x16xf32>
    %3 = tpu.iota {dimensions = array<i32: 0>} : vector<16x16xi32>
    %4 = tpu.iota {dimensions = array<i32: 1>} : vector<16x16xi32>
    %c1_i32 = arith.constant 1 : i32
    %5 = vector.broadcast %c1_i32 : i32 to vector<16x16xi32>
    %6 = arith.andi %3, %5 : vector<16x16xi32>
    %c1_i32_5 = arith.constant 1 : i32
    %7 = vector.broadcast %c1_i32_5 : i32 to vector<16x16xi32>
    %8 = arith.andi %4, %7 : vector<16x16xi32>
    %9 = arith.ori %6, %8 : vector<16x16xi32>
    %c0_i32 = arith.constant 0 : i32
    %10 = vector.broadcast %c0_i32 : i32 to vector<16x16xi32>
    %11 = arith.cmpi eq, %9, %10 : vector<16x16xi32>
    %cst = arith.constant 4.000000e+00 : f32
    %cst_6 = arith.constant 0.000000e+00 : f32
    %12 = vector.broadcast %cst : f32 to vector<16x16xf32>
    %13 = vector.broadcast %cst_6 : f32 to vector<16x16xf32>
    %14 = arith.select %11, %12, %13 : vector<16x16xi1>, vector<16x16xf32>
    %cst_7 = arith.constant 4.000000e-01 : f32
    %15 = vector.broadcast %cst_7 : f32 to vector<3x16x16xf32>
    %16 = arith.mulf %15, %2 : vector<3x16x16xf32>
    %17 = vector.extract_strided_slice %2 {offsets = [0, 0, 0], sizes = [3, 16, 1], strides = [1, 1, 1]} : vector<3x16x16xf32> to vector<3x16x1xf32>
    %18 = vector.extract_strided_slice %2 {offsets = [0, 0, 0], sizes = [3, 16, 15], strides = [1, 1, 1]} : vector<3x16x16xf32> to vector<3x16x15xf32>
    %19 = tpu.concatenate %17, %18 in 2 : vector<3x16x1xf32>, vector<3x16x15xf32> -> vector<3x16x16xf32>
    %20 = vector.extract_strided_slice %2 {offsets = [0, 0, 1], sizes = [3, 16, 15], strides = [1, 1, 1]} : vector<3x16x16xf32> to vector<3x16x15xf32>
    %21 = vector.extract_strided_slice %2 {offsets = [0, 0, 15], sizes = [3, 16, 1], strides = [1, 1, 1]} : vector<3x16x16xf32> to vector<3x16x1xf32>
    %22 = tpu.concatenate %20, %21 in 2 : vector<3x16x15xf32>, vector<3x16x1xf32> -> vector<3x16x16xf32>
    %23 = arith.addf %19, %22 : vector<3x16x16xf32>
    %cst_8 = arith.constant 2.500000e-01 : f32
    %24 = vector.broadcast %cst_8 : f32 to vector<3x16x16xf32>
    %25 = arith.mulf %24, %23 : vector<3x16x16xf32>
    %26 = arith.addf %16, %25 : vector<3x16x16xf32>
    %27 = vector.extract_strided_slice %2 {offsets = [0, 0, 0], sizes = [3, 16, 1], strides = [1, 1, 1]} : vector<3x16x16xf32> to vector<3x16x1xf32>
    %28 = vector.extract_strided_slice %2 {offsets = [0, 0, 0], sizes = [3, 16, 14], strides = [1, 1, 1]} : vector<3x16x16xf32> to vector<3x16x14xf32>
    %29 = tpu.concatenate %27, %27, %28 in 2 : vector<3x16x1xf32>, vector<3x16x1xf32>, vector<3x16x14xf32> -> vector<3x16x16xf32>
    %30 = vector.extract_strided_slice %2 {offsets = [0, 0, 2], sizes = [3, 16, 14], strides = [1, 1, 1]} : vector<3x16x16xf32> to vector<3x16x14xf32>
    %31 = vector.extract_strided_slice %2 {offsets = [0, 0, 15], sizes = [3, 16, 1], strides = [1, 1, 1]} : vector<3x16x16xf32> to vector<3x16x1xf32>
    %32 = tpu.concatenate %30, %31, %31 in 2 : vector<3x16x14xf32>, vector<3x16x1xf32>, vector<3x16x1xf32> -> vector<3x16x16xf32>
    %33 = arith.addf %29, %32 : vector<3x16x16xf32>
    %cst_9 = arith.constant 5.000000e-02 : f32
    %34 = vector.broadcast %cst_9 : f32 to vector<3x16x16xf32>
    %35 = arith.mulf %34, %33 : vector<3x16x16xf32>
    %36 = arith.addf %26, %35 : vector<3x16x16xf32>
    %cst_10 = arith.constant 4.000000e-01 : f32
    %37 = vector.broadcast %cst_10 : f32 to vector<3x16x16xf32>
    %38 = arith.mulf %37, %36 : vector<3x16x16xf32>
    %39 = vector.extract_strided_slice %36 {offsets = [0, 0, 0], sizes = [3, 1, 16], strides = [1, 1, 1]} : vector<3x16x16xf32> to vector<3x1x16xf32>
    %40 = vector.extract_strided_slice %36 {offsets = [0, 0, 0], sizes = [3, 15, 16], strides = [1, 1, 1]} : vector<3x16x16xf32> to vector<3x15x16xf32>
    %41 = tpu.concatenate %39, %40 in 1 : vector<3x1x16xf32>, vector<3x15x16xf32> -> vector<3x16x16xf32>
    %42 = vector.extract_strided_slice %36 {offsets = [0, 1, 0], sizes = [3, 15, 16], strides = [1, 1, 1]} : vector<3x16x16xf32> to vector<3x15x16xf32>
    %43 = vector.extract_strided_slice %36 {offsets = [0, 15, 0], sizes = [3, 1, 16], strides = [1, 1, 1]} : vector<3x16x16xf32> to vector<3x1x16xf32>
    %44 = tpu.concatenate %42, %43 in 1 : vector<3x15x16xf32>, vector<3x1x16xf32> -> vector<3x16x16xf32>
    %45 = arith.addf %41, %44 : vector<3x16x16xf32>
    %cst_11 = arith.constant 2.500000e-01 : f32
    %46 = vector.broadcast %cst_11 : f32 to vector<3x16x16xf32>
    %47 = arith.mulf %46, %45 : vector<3x16x16xf32>
    %48 = arith.addf %38, %47 : vector<3x16x16xf32>
    %49 = vector.extract_strided_slice %36 {offsets = [0, 0, 0], sizes = [3, 1, 16], strides = [1, 1, 1]} : vector<3x16x16xf32> to vector<3x1x16xf32>
    %50 = vector.extract_strided_slice %36 {offsets = [0, 0, 0], sizes = [3, 14, 16], strides = [1, 1, 1]} : vector<3x16x16xf32> to vector<3x14x16xf32>
    %51 = tpu.concatenate %49, %49, %50 in 1 : vector<3x1x16xf32>, vector<3x1x16xf32>, vector<3x14x16xf32> -> vector<3x16x16xf32>
    %52 = vector.extract_strided_slice %36 {offsets = [0, 2, 0], sizes = [3, 14, 16], strides = [1, 1, 1]} : vector<3x16x16xf32> to vector<3x14x16xf32>
    %53 = vector.extract_strided_slice %36 {offsets = [0, 15, 0], sizes = [3, 1, 16], strides = [1, 1, 1]} : vector<3x16x16xf32> to vector<3x1x16xf32>
    %54 = tpu.concatenate %52, %53, %53 in 1 : vector<3x14x16xf32>, vector<3x1x16xf32>, vector<3x1x16xf32> -> vector<3x16x16xf32>
    %55 = arith.addf %51, %54 : vector<3x16x16xf32>
    %cst_12 = arith.constant 5.000000e-02 : f32
    %56 = vector.broadcast %cst_12 : f32 to vector<3x16x16xf32>
    %57 = arith.mulf %56, %55 : vector<3x16x16xf32>
    %58 = arith.addf %48, %57 : vector<3x16x16xf32>
    %59 = vector.shape_cast %14 : vector<16x16xf32> to vector<1x16x16xf32>
    %60 = vector.broadcast %59 : vector<1x16x16xf32> to vector<3x16x16xf32>
    %61 = arith.mulf %60, %58 : vector<3x16x16xf32>
    %cst_13 = arith.constant 4.000000e-01 : f32
    %62 = vector.broadcast %cst_13 : f32 to vector<3x16x16xf32>
    %63 = arith.mulf %62, %61 : vector<3x16x16xf32>
    %64 = vector.extract_strided_slice %61 {offsets = [0, 0, 0], sizes = [3, 16, 1], strides = [1, 1, 1]} : vector<3x16x16xf32> to vector<3x16x1xf32>
    %65 = vector.extract_strided_slice %61 {offsets = [0, 0, 0], sizes = [3, 16, 15], strides = [1, 1, 1]} : vector<3x16x16xf32> to vector<3x16x15xf32>
    %66 = tpu.concatenate %64, %65 in 2 : vector<3x16x1xf32>, vector<3x16x15xf32> -> vector<3x16x16xf32>
    %67 = vector.extract_strided_slice %61 {offsets = [0, 0, 1], sizes = [3, 16, 15], strides = [1, 1, 1]} : vector<3x16x16xf32> to vector<3x16x15xf32>
    %68 = vector.extract_strided_slice %61 {offsets = [0, 0, 15], sizes = [3, 16, 1], strides = [1, 1, 1]} : vector<3x16x16xf32> to vector<3x16x1xf32>
    %69 = tpu.concatenate %67, %68 in 2 : vector<3x16x15xf32>, vector<3x16x1xf32> -> vector<3x16x16xf32>
    %70 = arith.addf %66, %69 : vector<3x16x16xf32>
    %cst_14 = arith.constant 2.500000e-01 : f32
    %71 = vector.broadcast %cst_14 : f32 to vector<3x16x16xf32>
    %72 = arith.mulf %71, %70 : vector<3x16x16xf32>
    %73 = arith.addf %63, %72 : vector<3x16x16xf32>
    %74 = vector.extract_strided_slice %61 {offsets = [0, 0, 0], sizes = [3, 16, 1], strides = [1, 1, 1]} : vector<3x16x16xf32> to vector<3x16x1xf32>
    %75 = vector.extract_strided_slice %61 {offsets = [0, 0, 0], sizes = [3, 16, 14], strides = [1, 1, 1]} : vector<3x16x16xf32> to vector<3x16x14xf32>
    %76 = tpu.concatenate %74, %74, %75 in 2 : vector<3x16x1xf32>, vector<3x16x1xf32>, vector<3x16x14xf32> -> vector<3x16x16xf32>
    %77 = vector.extract_strided_slice %61 {offsets = [0, 0, 2], sizes = [3, 16, 14], strides = [1, 1, 1]} : vector<3x16x16xf32> to vector<3x16x14xf32>
    %78 = vector.extract_strided_slice %61 {offsets = [0, 0, 15], sizes = [3, 16, 1], strides = [1, 1, 1]} : vector<3x16x16xf32> to vector<3x16x1xf32>
    %79 = tpu.concatenate %77, %78, %78 in 2 : vector<3x16x14xf32>, vector<3x16x1xf32>, vector<3x16x1xf32> -> vector<3x16x16xf32>
    %80 = arith.addf %76, %79 : vector<3x16x16xf32>
    %cst_15 = arith.constant 5.000000e-02 : f32
    %81 = vector.broadcast %cst_15 : f32 to vector<3x16x16xf32>
    %82 = arith.mulf %81, %80 : vector<3x16x16xf32>
    %83 = arith.addf %73, %82 : vector<3x16x16xf32>
    %cst_16 = arith.constant 4.000000e-01 : f32
    %84 = vector.broadcast %cst_16 : f32 to vector<3x16x16xf32>
    %85 = arith.mulf %84, %83 : vector<3x16x16xf32>
    %86 = vector.extract_strided_slice %83 {offsets = [0, 0, 0], sizes = [3, 1, 16], strides = [1, 1, 1]} : vector<3x16x16xf32> to vector<3x1x16xf32>
    %87 = vector.extract_strided_slice %83 {offsets = [0, 0, 0], sizes = [3, 15, 16], strides = [1, 1, 1]} : vector<3x16x16xf32> to vector<3x15x16xf32>
    %88 = tpu.concatenate %86, %87 in 1 : vector<3x1x16xf32>, vector<3x15x16xf32> -> vector<3x16x16xf32>
    %89 = vector.extract_strided_slice %83 {offsets = [0, 1, 0], sizes = [3, 15, 16], strides = [1, 1, 1]} : vector<3x16x16xf32> to vector<3x15x16xf32>
    %90 = vector.extract_strided_slice %83 {offsets = [0, 15, 0], sizes = [3, 1, 16], strides = [1, 1, 1]} : vector<3x16x16xf32> to vector<3x1x16xf32>
    %91 = tpu.concatenate %89, %90 in 1 : vector<3x15x16xf32>, vector<3x1x16xf32> -> vector<3x16x16xf32>
    %92 = arith.addf %88, %91 : vector<3x16x16xf32>
    %cst_17 = arith.constant 2.500000e-01 : f32
    %93 = vector.broadcast %cst_17 : f32 to vector<3x16x16xf32>
    %94 = arith.mulf %93, %92 : vector<3x16x16xf32>
    %95 = arith.addf %85, %94 : vector<3x16x16xf32>
    %96 = vector.extract_strided_slice %83 {offsets = [0, 0, 0], sizes = [3, 1, 16], strides = [1, 1, 1]} : vector<3x16x16xf32> to vector<3x1x16xf32>
    %97 = vector.extract_strided_slice %83 {offsets = [0, 0, 0], sizes = [3, 14, 16], strides = [1, 1, 1]} : vector<3x16x16xf32> to vector<3x14x16xf32>
    %98 = tpu.concatenate %96, %96, %97 in 1 : vector<3x1x16xf32>, vector<3x1x16xf32>, vector<3x14x16xf32> -> vector<3x16x16xf32>
    %99 = vector.extract_strided_slice %83 {offsets = [0, 2, 0], sizes = [3, 14, 16], strides = [1, 1, 1]} : vector<3x16x16xf32> to vector<3x14x16xf32>
    %100 = vector.extract_strided_slice %83 {offsets = [0, 15, 0], sizes = [3, 1, 16], strides = [1, 1, 1]} : vector<3x16x16xf32> to vector<3x1x16xf32>
    %101 = tpu.concatenate %99, %100, %100 in 1 : vector<3x14x16xf32>, vector<3x1x16xf32>, vector<3x1x16xf32> -> vector<3x16x16xf32>
    %102 = arith.addf %98, %101 : vector<3x16x16xf32>
    %cst_18 = arith.constant 5.000000e-02 : f32
    %103 = vector.broadcast %cst_18 : f32 to vector<3x16x16xf32>
    %104 = arith.mulf %103, %102 : vector<3x16x16xf32>
    %105 = arith.addf %95, %104 : vector<3x16x16xf32>
    %106 = arith.subf %2, %105 : vector<3x16x16xf32>
    %107 = arith.mulf %106, %106 : vector<3x16x16xf32>
    %cst_19 = arith.constant 9.99999997E-7 : f32
    %108 = vector.broadcast %cst_19 : f32 to vector<3x16x16xf32>
    %109 = arith.addf %107, %108 : vector<3x16x16xf32>
    %110 = math.sqrt %109 : vector<3x16x16xf32>
    %cst_20 = arith.constant dense<0.000000e+00> : vector<16x16xf32>
    %111 = vector.multi_reduction <add>, %110, %cst_20 [0] : vector<3x16x16xf32> to vector<16x16xf32>
    %112 = vector.shape_cast %111 : vector<16x16xf32> to vector<1x16x16xf32>
    %c0_21 = arith.constant 0 : index
    %c0_22 = arith.constant 0 : index
    %c0_23 = arith.constant 0 : index
    %113 = vector.load %arg3[%c0_21, %c0_22, %c0_23] : memref<1x16x16xf32, #tpu.memory_space<vmem>>, vector<1x16x16xf32>
    tpu.vector_store %arg3[%c0_21, %c0_22, %c0_23], %112 {strides = array<i32>} : memref<1x16x16xf32, #tpu.memory_space<vmem>>, vector<1x16x16xf32>,
    return
  }
  func.func @transform_0(%arg0: i32) -> (i32, i32, i32) {
    %c0_i32 = arith.constant 0 : i32
    %c0_i32_0 = arith.constant 0 : i32
    %c0_i32_1 = arith.constant 0 : i32
    return %arg0, %c0_i32, %c0_i32_0 : i32, i32, i32
  }
  func.func @transform_1(%arg0: i32) -> (i32, i32, i32) {
    %c0_i32 = arith.constant 0 : i32
    %c0_i32_0 = arith.constant 0 : i32
    %c0_i32_1 = arith.constant 0 : i32
    return %arg0, %c0_i32, %c0_i32_0 : i32, i32, i32
  }
  func.func @transform_2(%arg0: i32) -> (i32, i32, i32) {
    %c0_i32 = arith.constant 0 : i32
    %c0_i32_0 = arith.constant 0 : i32
    %c0_i32_1 = arith.constant 0 : i32
    return %arg0, %c0_i32, %c0_i32_0 : i32, i32, i32
  }
}

</mosaic_0001>

<llo_original>
// kernel: tpu_custom_call.1
$region0: #{tpu_custom_call.1}
  #allocation0 [shape = 'u32[]', space=smem, size = 0x4, offset = 0x4, fixed_abs, tag = 'smem constant byte address 0x4 - core index']
  #allocation1 [shape = 'u32[144,128]{1,0:T(1,128)}', space=vmem, size = 0x12000, scoped, tag = 'internal scratch']
  %s0 = inlined_call_operand.hbm [shape: f32[6,16,16], index: 0, kind: input, shape index: {}]
  %s1 = inlined_call_operand.hbm [shape: f32[6,16,16], index: 1, kind: input, shape index: {}]
  %s2 = inlined_call_operand.hbm [shape: f32[2,16,16], index: 2, kind: output, shape index: {}]
  %s3 = sld [smem:[#allocation0]]
  $region49: #{tpu_custom_call.1} parent=0
    _
  %s5 = ssub.s32 1, %s3
  %s6 = scalar_select 0, %s5, %s3
  $region1: #{tpu_custom_call.1} parent=0
    #allocation2 [shape = 'u8[49152]{0}', space=vmem, size = 0xc000, scoped, tag = 'input window, operand 0']
    #allocation3 [shape = 's32[2]{0}', space=sflag, size = 0x8, scoped, tag = 'scoped memory for tpu_custom_call.1']
    #allocation4 [shape = 's32[2]{0}', space=sflag, size = 0x8, scoped, tag = 'scoped memory for tpu_custom_call.1']
    #allocation5 [shape = 'u8[49152]{0}', space=vmem, size = 0xc000, scoped, tag = 'input window, operand 1']
    #allocation6 [shape = 's32[2]{0}', space=sflag, size = 0x8, scoped, tag = 'scoped memory for tpu_custom_call.1']
    #allocation7 [shape = 'u8[16384]{0}', space=vmem, size = 0x4000, scoped, tag = 'output window, operand 0']
    %7 = vsyncpa [#allocation3], 0
    %s8 = scalar_lea.sflag [#allocation3], 1
    %9 = vsyncpa %s8, 0
    %10 = vsyncpa [#allocation6], 0
    %s11 = scalar_lea.sflag [#allocation6], 1
    %12 = vsyncpa %s11, 0
    %13 = vsyncpa [#allocation4], 0
    %s14 = scalar_lea.sflag [#allocation4], 1
    %15 = vsyncpa %s14, 0
    loop: start=0, step=1, limit=4
    $region2: #{tpu_custom_call.1} parent=1 // loop_pre_header
      _
    $region3: #{tpu_custom_call.1} parent=1 // loop_header
      %s17 = sphi 0, %s21
      %p18 = scmp.ge.s32.totalorder %s17, 4
      %s27 = sphi 0, %s29
      %s30 = sphi 0, %s27
      %s31 = sphi 0, %s30
      %s47 = sphi 0, %s31
      %s53 = sphi 0, %s55
      %s56 = sphi 0, %s53
      %s57 = sphi 0, %s56
      %s73 = sphi 0, %s57
      %s79 = sphi 0, %s81
      %s82 = sphi 0, %s79
      %s83 = sphi 0, %s82
      %s99 = sphi 0, %s83
    $region4: #{tpu_custom_call.1} parent=1 // loop_header_branch
      %20 = sbr.rel (%p18) target = $region8
    $region5: #{tpu_custom_call.1} parent=1 // loop_body
      %s22 = ssub.s32 %s17, 1
      %s23 = ssub.s32 %s17, 2
      %s24 = sadd.s32 %s17, 1
      %s25 = ssub.s32 %s17, %s24
      %p26 = scmp.eq.s32.totalorder %s25, 0
      %s28 = sadd.s32 %s27, 1
      %s29 = scalar_select %p26, %s27, %s28
      %p32 = pneg %p26
      %p33 = scmp.eq.s32.totalorder %s17, 1
      %p34 = por %p32, %p33
      %p35 = scmp.ne.s32.totalorder %s27, %s30
      %p36 = scmp.eq.s32.totalorder %s17, 0
      %p37 = por %p35, %p36
      %p38 = scmp.ne.s32.totalorder %s27, %s30
      %p39 = scmp.eq.s32.totalorder %s22, 1
      %p40 = por %p38, %p39
      %p41 = scmp.ne.s32.totalorder %s30, %s31
      %p42 = scmp.eq.s32.totalorder %s22, 0
      %p43 = por %p41, %p42
      %p44 = scmp.ne.s32.totalorder %s30, %s31
      %p45 = scmp.eq.s32.totalorder %s23, 1
      %p46 = por %p44, %p45
      %p48 = scmp.ne.s32.totalorder %s31, %s47
      %p49 = scmp.eq.s32.totalorder %s23, 0
      %p50 = por %p48, %p49
      %s51 = ssub.s32 %s17, %s24
      %p52 = scmp.eq.s32.totalorder %s51, 0
      %s54 = sadd.s32 %s53, 1
      %s55 = scalar_select %p52, %s53, %s54
      %p58 = pneg %p52
      %p59 = scmp.eq.s32.totalorder %s17, 1
      %p60 = por %p58, %p59
      %p61 = scmp.ne.s32.totalorder %s53, %s56
      %p62 = scmp.eq.s32.totalorder %s17, 0
      %p63 = por %p61, %p62
      %p64 = scmp.ne.s32.totalorder %s53, %s56
      %p65 = scmp.eq.s32.totalorder %s22, 1
      %p66 = por %p64, %p65
      %p67 = scmp.ne.s32.totalorder %s56, %s57
      %p68 = scmp.eq.s32.totalorder %s22, 0
      %p69 = por %p67, %p68
      %p70 = scmp.ne.s32.totalorder %s56, %s57
      %p71 = scmp.eq.s32.totalorder %s23, 1
      %p72 = por %p70, %p71
      %p74 = scmp.ne.s32.totalorder %s57, %s73
      %p75 = scmp.eq.s32.totalorder %s23, 0
      %p76 = por %p74, %p75
      %s77 = ssub.s32 %s17, %s24
      %p78 = scmp.eq.s32.totalorder %s77, 0
      %s80 = sadd.s32 %s79, 1
      %s81 = scalar_select %p78, %s79, %s80
      %p84 = pneg %p78
      %p85 = scmp.eq.s32.totalorder %s17, 1
      %p86 = por %p84, %p85
      %p87 = scmp.ne.s32.totalorder %s79, %s82
      %p88 = scmp.eq.s32.totalorder %s17, 0
      %p89 = por %p87, %p88
      %p90 = scmp.ne.s32.totalorder %s79, %s82
      %p91 = scmp.eq.s32.totalorder %s22, 1
      %p92 = por %p90, %p91
      %p93 = scmp.ne.s32.totalorder %s82, %s83
      %p94 = scmp.eq.s32.totalorder %s22, 0
      %p95 = por %p93, %p94
      %p96 = scmp.ne.s32.totalorder %s82, %s83
      %p97 = scmp.eq.s32.totalorder %s23, 1
      %p98 = por %p96, %p97
      %p100 = scmp.ne.s32.totalorder %s83, %s99
      %p101 = scmp.eq.s32.totalorder %s23, 0
      %p102 = por %p100, %p101
      %p103 = scmp.le.s32.totalorder 1, %s17
      %p104 = scmp.lt.s32.totalorder %s17, 3
      %p105 = pnand %p103, %p104
      %p106 = pneg %p105
      // Predicated region
      $region9: #{tpu_custom_call.1} parent=5 // pred_check
        _
      $region10: #{tpu_custom_call.1} parent=5 // pred_check_branch
        %108 = sbr.rel (%p105) target = $region12
      $region11: #{tpu_custom_call.1} parent=5 // pred_region
        %s109 = ssub.s32 %s17, 1
      $region12: #{tpu_custom_call.1} parent=5 // pred_fallthru
        _
      %p110 = scmp.lt.s32.totalorder %s17, 2
      // Predicated region
      $region13: #{tpu_custom_call.1} parent=5 // pred_check
        %p111 = pneg %p110
      $region14: #{tpu_custom_call.1} parent=5 // pred_check_branch
        %113 = sbr.rel (%p111) target = $region16
      $region15: #{tpu_custom_call.1} parent=5 // pred_region
        // Predicated region
        $region17: #{tpu_custom_call.1} parent=15 // pred_check
          %p114 = pneg %p37
        $region18: #{tpu_custom_call.1} parent=15 // pred_check_branch
          %116 = sbr.rel (%p114) target = $region20
        $region19: #{tpu_custom_call.1} parent=15 // pred_region
          %s117 = sand.u32 %s27, 1
          %s118 = scalar_lea.sflag [#allocation3], %s117
          %s119 = sand.u32 %s27, 1
          %s120 = smul.addr %s119, 48
          %s121 = scalar_lea.vmem [#allocation2], %s120
          %s122 = smul.u32 3, %s17
          %s124 = ssub.s32 768, 768
          %125 = vsyncadd %s118, %s124
          %s126 = smul.addr %s122, 2
          %s127 = smul.addr %s126, 128
          %s128 = scalar_lea.hbm %s0, %s127
          %s129 = sshll.u32 %s121, 4
          %s130 = int_to_ptr.vmem [resolvable:$true] %s129
          %135 = dma.hbm_to_vmem [thread:$0]  %s128, 768, %s130, %s118, 128, 128, 8
        $region20: #{tpu_custom_call.1} parent=15 // pred_fallthru
          _
        // Predicated region
        $region21: #{tpu_custom_call.1} parent=15 // pred_check
          %p136 = pneg %p63
        $region22: #{tpu_custom_call.1} parent=15 // pred_check_branch
          %138 = sbr.rel (%p136) target = $region24
        $region23: #{tpu_custom_call.1} parent=15 // pred_region
          %s139 = sand.u32 %s53, 1
          %s140 = scalar_lea.sflag [#allocation6], %s139
          %s141 = sand.u32 %s53, 1
          %s142 = smul.addr %s141, 48
          %s143 = scalar_lea.vmem [#allocation5], %s142
          %s144 = smul.u32 3, %s17
          %s146 = ssub.s32 768, 768
          %147 = vsyncadd %s140, %s146
          %s148 = smul.addr %s144, 2
          %s149 = smul.addr %s148, 128
          %s150 = scalar_lea.hbm %s1, %s149
          %s151 = sshll.u32 %s143, 4
          %s152 = int_to_ptr.vmem [resolvable:$true] %s151
          %157 = dma.hbm_to_vmem [thread:$0]  %s150, 768, %s152, %s140, 128, 128, 8
        $region24: #{tpu_custom_call.1} parent=15 // pred_fallthru
          _
      $region16: #{tpu_custom_call.1} parent=5 // pred_fallthru
        _
      %p158 = scmp.le.s32.totalorder 1, %s17
      %p159 = scmp.lt.s32.totalorder %s17, 3
      %p160 = pnand %p158, %p159
      %p161 = pneg %p160
      // Predicated region
      $region25: #{tpu_custom_call.1} parent=5 // pred_check
        _
      $region26: #{tpu_custom_call.1} parent=5 // pred_check_branch
        %163 = sbr.rel (%p160) target = $region28
      $region27: #{tpu_custom_call.1} parent=5 // pred_region
        %s164 = ssub.s32 %s17, 1
        %s165 = sand.u32 %s30, 1
        %s166 = scalar_lea.sflag [#allocation3], %s165
        %s167 = sand.u32 %s30, 1
        %s168 = smul.addr %s167, 48
        %s169 = scalar_lea.vmem [#allocation2], %s168
        // Predicated region
        $region29: #{tpu_custom_call.1} parent=27 // pred_check
          %p170 = pneg %p43
        $region30: #{tpu_custom_call.1} parent=27 // pred_check_branch
          %172 = sbr.rel (%p170) target = $region32
        $region31: #{tpu_custom_call.1} parent=27 // pred_region
          %173 = dma.done %s166, 768
        $region32: #{tpu_custom_call.1} parent=27 // pred_fallthru
          _
        %s174 = sand.u32 %s56, 1
        %s175 = scalar_lea.sflag [#allocation6], %s174
        %s176 = sand.u32 %s56, 1
        %s177 = smul.addr %s176, 48
        %s178 = scalar_lea.vmem [#allocation5], %s177
        // Predicated region
        $region33: #{tpu_custom_call.1} parent=27 // pred_check
          %p179 = pneg %p69
        $region34: #{tpu_custom_call.1} parent=27 // pred_check_branch
          %181 = sbr.rel (%p179) target = $region36
        $region35: #{tpu_custom_call.1} parent=27 // pred_region
          %182 = dma.done %s175, 768
        $region36: #{tpu_custom_call.1} parent=27 // pred_fallthru
          _
        %s183 = sand.u32 %s30, 1
        %s184 = scalar_lea.sflag [#allocation3], %s183
        %s185 = sand.u32 %s30, 1
        %s186 = smul.addr %s185, 48
        %s187 = scalar_lea.vmem [#allocation2], %s186
        %p188 = pneg %p43
        %p189 = pneg %p40
        %s190 = sand.u32 %s56, 1
        %s191 = scalar_lea.sflag [#allocation6], %s190
        %s192 = sand.u32 %s56, 1
        %s193 = smul.addr %s192, 48
        %s194 = scalar_lea.vmem [#allocation5], %s193
        %p195 = pneg %p69
        %p196 = pneg %p66
        %p197 = pneg %p95
        %p198 = pneg %p92
        %s199 = sand.u32 %s82, 1
        %s200 = scalar_lea.sflag [#allocation4], %s199
        %s201 = sand.u32 %s82, 1
        %s202 = smul.addr %s201, 16
        %s203 = scalar_lea.vmem [#allocation7], %s202
        %s204 = smul.u32 3, %s22
        %s205 = smul.u32 3, %s22
        %v206 = vld [vmem:[%s169] sm:$0xff]
        %v207 = vld [vmem:[%s169 + $0x8] sm:$0xff]
        %v208 = vld [vmem:[%s169 + $0x10] sm:$0xff]
        %v209 = vld [vmem:[%s169 + $0x18] sm:$0xff]
        %v210 = vld [vmem:[%s169 + $0x20] sm:$0xff]
        %v211 = vld [vmem:[%s169 + $0x28] sm:$0xff]
        %v212 = vld [vmem:[%s178] sm:$0xff]
        %v213 = vld [vmem:[%s178 + $0x8] sm:$0xff]
        %v214 = vld [vmem:[%s178 + $0x10] sm:$0xff]
        %v215 = vld [vmem:[%s178 + $0x18] sm:$0xff]
        %v216 = vld [vmem:[%s178 + $0x20] sm:$0xff]
        %v217 = vld [vmem:[%s178 + $0x28] sm:$0xff]
        %v218 = vsub.f32 %v206, %v212
        %v219 = vsub.f32 %v207, %v213
        %v220 = vsub.f32 %v208, %v214
        %v221 = vsub.f32 %v209, %v215
        %v222 = vsub.f32 %v210, %v216
        %v223 = vsub.f32 %v211, %v217
        %v224 = vlaneseq
        %v225 = vshrl.u32 %v224, 7
        %v226 = vadd.s32 %v225, 8
        %v227 = vlaneseq
        %v228 = vand.u32 %v227, 127
        %v229 = vand.u32 %v225, 1
        %v230 = vand.u32 %v226, 1
        %v231 = vand.u32 %v228, 1
        %v232 = vor.u32 %v229, %v231
        %v233 = vor.u32 %v230, %v231
        %vm234 = vcmp.eq.s32.totalorder %v232, 0
        %vm235 = vcmp.eq.s32.totalorder %v233, 0
        %v236 = vsel %vm234, 4.0, 0.0
        %v237 = vsel %vm235, 4.0, 0.0
        %v238 = vmul.f32 %v218, 0.4
        %v239 = vmul.f32 %v219, 0.4
        %v240 = vmul.f32 %v220, 0.4
        %v241 = vmul.f32 %v221, 0.4
        %v242 = vmul.f32 %v222, 0.4
        %v243 = vmul.f32 %v223, 0.4
        %250 = vrot.lane.b32.xlu0 %v218, 1
        %v251 = vpop.permute.xlu0 %250
        %252 = vrot.lane.b32.xlu0 %v219, 1
        %v253 = vpop.permute.xlu0 %252
        %254 = vrot.lane.b32.xlu0 %v220, 1
        %v255 = vpop.permute.xlu0 %254
        %256 = vrot.lane.b32.xlu0 %v221, 1
        %v257 = vpop.permute.xlu0 %256
        %258 = vrot.lane.b32.xlu0 %v222, 1
        %v259 = vpop.permute.xlu0 %258
        %260 = vrot.lane.b32.xlu0 %v223, 1
        %v261 = vpop.permute.xlu0 %260
        %vm268 = vcmask 7168
        %v269 = vsel %vm268, %v218, %v251
        %v270 = vsel %vm268, %v219, %v253
        %v271 = vsel %vm268, %v220, %v255
        %v272 = vsel %vm268, %v221, %v257
        %v273 = vsel %vm268, %v222, %v259
        %v274 = vsel %vm268, %v223, %v261
        %275 = vrot.lane.b32.xlu0 %v218, 127
        %v276 = vpop.permute.xlu0 %275
        %277 = vrot.lane.b32.xlu0 %v219, 127
        %v278 = vpop.permute.xlu0 %277
        %279 = vrot.lane.b32.xlu0 %v220, 127
        %v280 = vpop.permute.xlu0 %279
        %281 = vrot.lane.b32.xlu0 %v221, 127
        %v282 = vpop.permute.xlu0 %281
        %283 = vrot.lane.b32.xlu0 %v222, 127
        %v284 = vpop.permute.xlu0 %283
        %285 = vrot.lane.b32.xlu0 %v223, 127
        %v286 = vpop.permute.xlu0 %285
        %vm293 = vcmask 121856
        %v294 = vsel %vm293, %v276, %v218
        %v295 = vsel %vm293, %v278, %v219
        %v296 = vsel %vm293, %v280, %v220
        %v297 = vsel %vm293, %v282, %v221
        %v298 = vsel %vm293, %v284, %v222
        %v299 = vsel %vm293, %v286, %v223
        %v300 = vadd.f32 %v269, %v294
        %v301 = vadd.f32 %v270, %v295
        %v302 = vadd.f32 %v271, %v296
        %v303 = vadd.f32 %v272, %v297
        %v304 = vadd.f32 %v273, %v298
        %v305 = vadd.f32 %v274, %v299
        %v306 = vmul.f32 %v300, 0.25
        %v307 = vmul.f32 %v301, 0.25
        %v308 = vmul.f32 %v302, 0.25
        %v309 = vmul.f32 %v303, 0.25
        %v310 = vmul.f32 %v304, 0.25
        %v311 = vmul.f32 %v305, 0.25
        %v312 = vadd.f32 %v238, %v306
        %v313 = vadd.f32 %v239, %v307
        %v314 = vadd.f32 %v240, %v308
        %v315 = vadd.f32 %v241, %v309
        %v316 = vadd.f32 %v242, %v310
        %v317 = vadd.f32 %v243, %v311
        %318 = vrot.lane.b32.xlu0 %v218, 2
        %v319 = vpop.permute.xlu0 %318
        %320 = vrot.lane.b32.xlu0 %v219, 2
        %v321 = vpop.permute.xlu0 %320
        %322 = vrot.lane.b32.xlu0 %v220, 2
        %v323 = vpop.permute.xlu0 %322
        %324 = vrot.lane.b32.xlu0 %v221, 2
        %v325 = vpop.permute.xlu0 %324
        %326 = vrot.lane.b32.xlu0 %v222, 2
        %v327 = vpop.permute.xlu0 %326
        %328 = vrot.lane.b32.xlu0 %v223, 2
        %v329 = vpop.permute.xlu0 %328
        %vm336 = vcmask 15360
        %v337 = vsel %vm336, %v269, %v319
        %v338 = vsel %vm336, %v270, %v321
        %v339 = vsel %vm336, %v271, %v323
        %v340 = vsel %vm336, %v272, %v325
        %v341 = vsel %vm336, %v273, %v327
        %v342 = vsel %vm336, %v274, %v329
        %343 = vrot.lane.b32.xlu0 %v218, 126
        %v344 = vpop.permute.xlu0 %343
        %345 = vrot.lane.b32.xlu0 %v219, 126
        %v346 = vpop.permute.xlu0 %345
        %347 = vrot.lane.b32.xlu0 %v220, 126
        %v348 = vpop.permute.xlu0 %347
        %349 = vrot.lane.b32.xlu0 %v221, 126
        %v350 = vpop.permute.xlu0 %349
        %351 = vrot.lane.b32.xlu0 %v222, 126
        %v352 = vpop.permute.xlu0 %351
        %353 = vrot.lane.b32.xlu0 %v223, 126
        %v354 = vpop.permute.xlu0 %353
        %vm361 = vcmask 113664
        %v362 = vsel %vm361, %v344, %v276
        %v363 = vsel %vm361, %v346, %v278
        %v364 = vsel %vm361, %v348, %v280
        %v365 = vsel %vm361, %v350, %v282
        %v366 = vsel %vm361, %v352, %v284
        %v367 = vsel %vm361, %v354, %v286
        %v368 = vsel %vm293, %v362, %v218
        %v369 = vsel %vm293, %v363, %v219
        %v370 = vsel %vm293, %v364, %v220
        %v371 = vsel %vm293, %v365, %v221
        %v372 = vsel %vm293, %v366, %v222
        %v373 = vsel %vm293, %v367, %v223
        %v374 = vadd.f32 %v337, %v368
        %v375 = vadd.f32 %v338, %v369
        %v376 = vadd.f32 %v339, %v370
        %v377 = vadd.f32 %v340, %v371
        %v378 = vadd.f32 %v341, %v372
        %v379 = vadd.f32 %v342, %v373
        %v380 = vmul.f32 %v374, 0.05
        %v381 = vmul.f32 %v375, 0.05
        %v382 = vmul.f32 %v376, 0.05
        %v383 = vmul.f32 %v377, 0.05
        %v384 = vmul.f32 %v378, 0.05
        %v385 = vmul.f32 %v379, 0.05
        %v386 = vadd.f32 %v312, %v380
        %v387 = vadd.f32 %v313, %v381
        %v388 = vadd.f32 %v314, %v382
        %v389 = vadd.f32 %v315, %v383
        %v390 = vadd.f32 %v316, %v384
        %v391 = vadd.f32 %v317, %v385
        %v392 = vmul.f32 %v386, 0.4
        %v393 = vmul.f32 %v387, 0.4
        %v394 = vmul.f32 %v388, 0.4
        %v395 = vmul.f32 %v389, 0.4
        %v396 = vmul.f32 %v390, 0.4
        %v397 = vmul.f32 %v391, 0.4
        %vm404 = vcmask 1040384
        %v405 = vrot.slane %v386, 7
        %v406 = vrot.slane %v387, 7
        %v407 = vsel %vm404, %v405, %v406
        %v408 = vrot.slane %v388, 7
        %v409 = vrot.slane %v389, 7
        %v410 = vsel %vm404, %v408, %v409
        %v411 = vrot.slane %v390, 7
        %v412 = vrot.slane %v391, 7
        %v413 = vsel %vm404, %v411, %v412
        %v420 = vsel %vm404, %v386, %v405
        %v421 = vsel %vm404, %v388, %v408
        %v422 = vsel %vm404, %v390, %v411
        %vm423 = vcmask 1046528
        %v424 = vrot.slane %v386, 1
        %v425 = vrot.slane %v387, 1
        %v426 = vsel %vm423, %v424, %v425
        %v427 = vrot.slane %v388, 1
        %v428 = vrot.slane %v389, 1
        %v429 = vsel %vm423, %v427, %v428
        %v430 = vrot.slane %v390, 1
        %v431 = vrot.slane %v391, 1
        %v432 = vsel %vm423, %v430, %v431
        %v439 = vsel %vm423, %v425, %v387
        %v440 = vsel %vm423, %v428, %v389
        %v441 = vsel %vm423, %v431, %v391
        %v442 = vadd.f32 %v420, %v426
        %v443 = vadd.f32 %v407, %v439
        %v444 = vadd.f32 %v421, %v429
        %v445 = vadd.f32 %v410, %v440
        %v446 = vadd.f32 %v422, %v432
        %v447 = vadd.f32 %v413, %v441
        %v448 = vmul.f32 %v442, 0.25
        %v449 = vmul.f32 %v443, 0.25
        %v450 = vmul.f32 %v444, 0.25
        %v451 = vmul.f32 %v445, 0.25
        %v452 = vmul.f32 %v446, 0.25
        %v453 = vmul.f32 %v447, 0.25
        %v454 = vadd.f32 %v392, %v448
        %v455 = vadd.f32 %v393, %v449
        %v456 = vadd.f32 %v394, %v450
        %v457 = vadd.f32 %v395, %v451
        %v458 = vadd.f32 %v396, %v452
        %v459 = vadd.f32 %v397, %v453
        %vm460 = vcmask 1041408
        %v461 = vrot.slane %v386, 6
        %v462 = vrot.slane %v387, 6
        %v463 = vsel %vm460, %v461, %v462
        %v464 = vrot.slane %v388, 6
        %v465 = vrot.slane %v389, 6
        %v466 = vsel %vm460, %v464, %v465
        %v467 = vrot.slane %v390, 6
        %v468 = vrot.slane %v391, 6
        %v469 = vsel %vm460, %v467, %v468
        %v476 = vsel %vm460, %v420, %v461
        %v477 = vsel %vm460, %v421, %v464
        %v478 = vsel %vm460, %v422, %v467
        %vm479 = vcmask 1045504
        %v480 = vrot.slane %v386, 2
        %v481 = vrot.slane %v387, 2
        %v482 = vsel %vm479, %v480, %v481
        %v483 = vrot.slane %v388, 2
        %v484 = vrot.slane %v389, 2
        %v485 = vsel %vm479, %v483, %v484
        %v486 = vrot.slane %v390, 2
        %v487 = vrot.slane %v391, 2
        %v488 = vsel %vm479, %v486, %v487
        %v495 = vsel %vm479, %v481, %v425
        %v496 = vsel %vm479, %v484, %v428
        %v497 = vsel %vm479, %v487, %v431
        %v498 = vsel %vm423, %v495, %v387
        %v499 = vsel %vm423, %v496, %v389
        %v500 = vsel %vm423, %v497, %v391
        %v501 = vadd.f32 %v476, %v482
        %v502 = vadd.f32 %v463, %v498
        %v503 = vadd.f32 %v477, %v485
        %v504 = vadd.f32 %v466, %v499
        %v505 = vadd.f32 %v478, %v488
        %v506 = vadd.f32 %v469, %v500
        %v507 = vmul.f32 %v501, 0.05
        %v508 = vmul.f32 %v502, 0.05
        %v509 = vmul.f32 %v503, 0.05
        %v510 = vmul.f32 %v504, 0.05
        %v511 = vmul.f32 %v505, 0.05
        %v512 = vmul.f32 %v506, 0.05
        %v513 = vadd.f32 %v454, %v507
        %v514 = vadd.f32 %v455, %v508
        %v515 = vadd.f32 %v456, %v509
        %v516 = vadd.f32 %v457, %v510
        %v517 = vadd.f32 %v458, %v511
        %v518 = vadd.f32 %v459, %v512
        %v519 = vmul.f32 %v236, %v513
        %v520 = vmul.f32 %v237, %v514
        %v521 = vmul.f32 %v236, %v515
        %v522 = vmul.f32 %v237, %v516
        %v523 = vmul.f32 %v236, %v517
        %v524 = vmul.f32 %v237, %v518
        %v525 = vmul.f32 %v519, 0.4
        %v526 = vmul.f32 %v520, 0.4
        %v527 = vmul.f32 %v521, 0.4
        %v528 = vmul.f32 %v522, 0.4
        %v529 = vmul.f32 %v523, 0.4
        %v530 = vmul.f32 %v524, 0.4
        %537 = vrot.lane.b32.xlu0 %v519, 1
        %v538 = vpop.permute.xlu0 %537
        %539 = vrot.lane.b32.xlu0 %v520, 1
        %v540 = vpop.permute.xlu0 %539
        %541 = vrot.lane.b32.xlu0 %v521, 1
        %v542 = vpop.permute.xlu0 %541
        %543 = vrot.lane.b32.xlu0 %v522, 1
        %v544 = vpop.permute.xlu0 %543
        %545 = vrot.lane.b32.xlu0 %v523, 1
        %v546 = vpop.permute.xlu0 %545
        %547 = vrot.lane.b32.xlu0 %v524, 1
        %v548 = vpop.permute.xlu0 %547
        %v555 = vsel %vm268, %v519, %v538
        %v556 = vsel %vm268, %v520, %v540
        %v557 = vsel %vm268, %v521, %v542
        %v558 = vsel %vm268, %v522, %v544
        %v559 = vsel %vm268, %v523, %v546
        %v560 = vsel %vm268, %v524, %v548
        %561 = vrot.lane.b32.xlu0 %v519, 127
        %v562 = vpop.permute.xlu0 %561
        %563 = vrot.lane.b32.xlu0 %v520, 127
        %v564 = vpop.permute.xlu0 %563
        %565 = vrot.lane.b32.xlu0 %v521, 127
        %v566 = vpop.permute.xlu0 %565
        %567 = vrot.lane.b32.xlu0 %v522, 127
        %v568 = vpop.permute.xlu0 %567
        %569 = vrot.lane.b32.xlu0 %v523, 127
        %v570 = vpop.permute.xlu0 %569
        %571 = vrot.lane.b32.xlu0 %v524, 127
        %v572 = vpop.permute.xlu0 %571
        %v579 = vsel %vm293, %v562, %v519
        %v580 = vsel %vm293, %v564, %v520
        %v581 = vsel %vm293, %v566, %v521
        %v582 = vsel %vm293, %v568, %v522
        %v583 = vsel %vm293, %v570, %v523
        %v584 = vsel %vm293, %v572, %v524
        %v585 = vadd.f32 %v555, %v579
        %v586 = vadd.f32 %v556, %v580
        %v587 = vadd.f32 %v557, %v581
        %v588 = vadd.f32 %v558, %v582
        %v589 = vadd.f32 %v559, %v583
        %v590 = vadd.f32 %v560, %v584
        %v591 = vmul.f32 %v585, 0.25
        %v592 = vmul.f32 %v586, 0.25
        %v593 = vmul.f32 %v587, 0.25
        %v594 = vmul.f32 %v588, 0.25
        %v595 = vmul.f32 %v589, 0.25
        %v596 = vmul.f32 %v590, 0.25
        %v597 = vadd.f32 %v525, %v591
        %v598 = vadd.f32 %v526, %v592
        %v599 = vadd.f32 %v527, %v593
        %v600 = vadd.f32 %v528, %v594
        %v601 = vadd.f32 %v529, %v595
        %v602 = vadd.f32 %v530, %v596
        %603 = vrot.lane.b32.xlu0 %v519, 2
        %v604 = vpop.permute.xlu0 %603
        %605 = vrot.lane.b32.xlu0 %v520, 2
        %v606 = vpop.permute.xlu0 %605
        %607 = vrot.lane.b32.xlu0 %v521, 2
        %v608 = vpop.permute.xlu0 %607
        %609 = vrot.lane.b32.xlu0 %v522, 2
        %v610 = vpop.permute.xlu0 %609
        %611 = vrot.lane.b32.xlu0 %v523, 2
        %v612 = vpop.permute.xlu0 %611
        %613 = vrot.lane.b32.xlu0 %v524, 2
        %v614 = vpop.permute.xlu0 %613
        %v621 = vsel %vm336, %v555, %v604
        %v622 = vsel %vm336, %v556, %v606
        %v623 = vsel %vm336, %v557, %v608
        %v624 = vsel %vm336, %v558, %v610
        %v625 = vsel %vm336, %v559, %v612
        %v626 = vsel %vm336, %v560, %v614
        %627 = vrot.lane.b32.xlu0 %v519, 126
        %v628 = vpop.permute.xlu0 %627
        %629 = vrot.lane.b32.xlu0 %v520, 126
        %v630 = vpop.permute.xlu0 %629
        %631 = vrot.lane.b32.xlu0 %v521, 126
        %v632 = vpop.permute.xlu0 %631
        %633 = vrot.lane.b32.xlu0 %v522, 126
        %v634 = vpop.permute.xlu0 %633
        %635 = vrot.lane.b32.xlu0 %v523, 126
        %v636 = vpop.permute.xlu0 %635
        %637 = vrot.lane.b32.xlu0 %v524, 126
        %v638 = vpop.permute.xlu0 %637
        %v645 = vsel %vm361, %v628, %v562
        %v646 = vsel %vm361, %v630, %v564
        %v647 = vsel %vm361, %v632, %v566
        %v648 = vsel %vm361, %v634, %v568
        %v649 = vsel %vm361, %v636, %v570
        %v650 = vsel %vm361, %v638, %v572
        %v651 = vsel %vm293, %v645, %v519
        %v652 = vsel %vm293, %v646, %v520
        %v653 = vsel %vm293, %v647, %v521
        %v654 = vsel %vm293, %v648, %v522
        %v655 = vsel %vm293, %v649, %v523
        %v656 = vsel %vm293, %v650, %v524
        %v657 = vadd.f32 %v621, %v651
        %v658 = vadd.f32 %v622, %v652
        %v659 = vadd.f32 %v623, %v653
        %v660 = vadd.f32 %v624, %v654
        %v661 = vadd.f32 %v625, %v655
        %v662 = vadd.f32 %v626, %v656
        %v663 = vmul.f32 %v657, 0.05
        %v664 = vmul.f32 %v658, 0.05
        %v665 = vmul.f32 %v659, 0.05
        %v666 = vmul.f32 %v660, 0.05
        %v667 = vmul.f32 %v661, 0.05
        %v668 = vmul.f32 %v662, 0.05
        %v669 = vadd.f32 %v597, %v663
        %v670 = vadd.f32 %v598, %v664
        %v671 = vadd.f32 %v599, %v665
        %v672 = vadd.f32 %v600, %v666
        %v673 = vadd.f32 %v601, %v667
        %v674 = vadd.f32 %v602, %v668
        %v675 = vmul.f32 %v669, 0.4
        %v676 = vmul.f32 %v670, 0.4
        %v677 = vmul.f32 %v671, 0.4
        %v678 = vmul.f32 %v672, 0.4
        %v679 = vmul.f32 %v673, 0.4
        %v680 = vmul.f32 %v674, 0.4
        %v687 = vrot.slane %v669, 7
        %v688 = vrot.slane %v670, 7
        %v689 = vsel %vm404, %v687, %v688
        %v690 = vrot.slane %v671, 7
        %v691 = vrot.slane %v672, 7
        %v692 = vsel %vm404, %v690, %v691
        %v693 = vrot.slane %v673, 7
        %v694 = vrot.slane %v674, 7
        %v695 = vsel %vm404, %v693, %v694
        %v702 = vsel %vm404, %v669, %v687
        %v703 = vsel %vm404, %v671, %v690
        %v704 = vsel %vm404, %v673, %v693
        %v705 = vrot.slane %v669, 1
        %v706 = vrot.slane %v670, 1
        %v707 = vsel %vm423, %v705, %v706
        %v708 = vrot.slane %v671, 1
        %v709 = vrot.slane %v672, 1
        %v710 = vsel %vm423, %v708, %v709
        %v711 = vrot.slane %v673, 1
        %v712 = vrot.slane %v674, 1
        %v713 = vsel %vm423, %v711, %v712
        %v720 = vsel %vm423, %v706, %v670
        %v721 = vsel %vm423, %v709, %v672
        %v722 = vsel %vm423, %v712, %v674
        %v723 = vadd.f32 %v702, %v707
        %v724 = vadd.f32 %v689, %v720
        %v725 = vadd.f32 %v703, %v710
        %v726 = vadd.f32 %v692, %v721
        %v727 = vadd.f32 %v704, %v713
        %v728 = vadd.f32 %v695, %v722
        %v729 = vmul.f32 %v723, 0.25
        %v730 = vmul.f32 %v724, 0.25
        %v731 = vmul.f32 %v725, 0.25
        %v732 = vmul.f32 %v726, 0.25
        %v733 = vmul.f32 %v727, 0.25
        %v734 = vmul.f32 %v728, 0.25
        %v735 = vadd.f32 %v675, %v729
        %v736 = vadd.f32 %v676, %v730
        %v737 = vadd.f32 %v677, %v731
        %v738 = vadd.f32 %v678, %v732
        %v739 = vadd.f32 %v679, %v733
        %v740 = vadd.f32 %v680, %v734
        %v741 = vrot.slane %v669, 6
        %v742 = vrot.slane %v670, 6
        %v743 = vsel %vm460, %v741, %v742
        %v744 = vrot.slane %v671, 6
        %v745 = vrot.slane %v672, 6
        %v746 = vsel %vm460, %v744, %v745
        %v747 = vrot.slane %v673, 6
        %v748 = vrot.slane %v674, 6
        %v749 = vsel %vm460, %v747, %v748
        %v756 = vsel %vm460, %v702, %v741
        %v757 = vsel %vm460, %v703, %v744
        %v758 = vsel %vm460, %v704, %v747
        %v759 = vrot.slane %v669, 2
        %v760 = vrot.slane %v670, 2
        %v761 = vsel %vm479, %v759, %v760
        %v762 = vrot.slane %v671, 2
        %v763 = vrot.slane %v672, 2
        %v764 = vsel %vm479, %v762, %v763
        %v765 = vrot.slane %v673, 2
        %v766 = vrot.slane %v674, 2
        %v767 = vsel %vm479, %v765, %v766
        %v774 = vsel %vm479, %v760, %v706
        %v775 = vsel %vm479, %v763, %v709
        %v776 = vsel %vm479, %v766, %v712
        %v777 = vsel %vm423, %v774, %v670
        %v778 = vsel %vm423, %v775, %v672
        %v779 = vsel %vm423, %v776, %v674
        %v780 = vadd.f32 %v756, %v761
        %v781 = vadd.f32 %v743, %v777
        %v782 = vadd.f32 %v757, %v764
        %v783 = vadd.f32 %v746, %v778
        %v784 = vadd.f32 %v758, %v767
        %v785 = vadd.f32 %v749, %v779
        %v786 = vmul.f32 %v780, 0.05
        %v787 = vmul.f32 %v781, 0.05
        %v788 = vmul.f32 %v782, 0.05
        %v789 = vmul.f32 %v783, 0.05
        %v790 = vmul.f32 %v784, 0.05
        %v791 = vmul.f32 %v785, 0.05
        %v792 = vadd.f32 %v735, %v786
        %v793 = vadd.f32 %v736, %v787
        %v794 = vadd.f32 %v737, %v788
        %v795 = vadd.f32 %v738, %v789
        %v796 = vadd.f32 %v739, %v790
        %v797 = vadd.f32 %v740, %v791
        %v798 = vsub.f32 %v218, %v792
        %v799 = vsub.f32 %v219, %v793
        %v800 = vsub.f32 %v220, %v794
        %v801 = vsub.f32 %v221, %v795
        %v802 = vsub.f32 %v222, %v796
        %v803 = vsub.f32 %v223, %v797
        %v804 = vmul.f32 %v798, %v798
        %v805 = vmul.f32 %v799, %v799
        %v806 = vmul.f32 %v800, %v800
        %v807 = vmul.f32 %v801, %v801
        %v808 = vmul.f32 %v802, %v802
        %v809 = vmul.f32 %v803, %v803
        %v810 = vadd.f32 %v804, 1e-06
        %v811 = vadd.f32 %v805, 1e-06
        %v812 = vadd.f32 %v806, 1e-06
        %v813 = vadd.f32 %v807, 1e-06
        %v814 = vadd.f32 %v808, 1e-06
        %v815 = vadd.f32 %v809, 1e-06
        %v816 = vrsqrt.pop %v810
        %v817 = vmul.f32 %v810, %v816
        %vm818 = vcmp.eq.f32.partialorder %v810, inf
        %v819 = vsel %vm818, %v810, %v817
        %vm820 = vcmp.eq.f32.partialorder %v810, 0.0
        %v821 = vand.u32 %v810, 2147483648
        %v822 = vsel %vm820, %v821, %v819
        %v823 = vrsqrt.pop %v811
        %v824 = vmul.f32 %v811, %v823
        %vm825 = vcmp.eq.f32.partialorder %v811, inf
        %v826 = vsel %vm825, %v811, %v824
        %vm827 = vcmp.eq.f32.partialorder %v811, 0.0
        %v828 = vand.u32 %v811, 2147483648
        %v829 = vsel %vm827, %v828, %v826
        %v830 = vrsqrt.pop %v812
        %v831 = vmul.f32 %v812, %v830
        %vm832 = vcmp.eq.f32.partialorder %v812, inf
        %v833 = vsel %vm832, %v812, %v831
        %vm834 = vcmp.eq.f32.partialorder %v812, 0.0
        %v835 = vand.u32 %v812, 2147483648
        %v836 = vsel %vm834, %v835, %v833
        %v837 = vrsqrt.pop %v813
        %v838 = vmul.f32 %v813, %v837
        %vm839 = vcmp.eq.f32.partialorder %v813, inf
        %v840 = vsel %vm839, %v813, %v838
        %vm841 = vcmp.eq.f32.partialorder %v813, 0.0
        %v842 = vand.u32 %v813, 2147483648
        %v843 = vsel %vm841, %v842, %v840
        %v844 = vrsqrt.pop %v814
        %v845 = vmul.f32 %v814, %v844
        %vm846 = vcmp.eq.f32.partialorder %v814, inf
        %v847 = vsel %vm846, %v814, %v845
        %vm848 = vcmp.eq.f32.partialorder %v814, 0.0
        %v849 = vand.u32 %v814, 2147483648
        %v850 = vsel %vm848, %v849, %v847
        %v851 = vrsqrt.pop %v815
        %v852 = vmul.f32 %v815, %v851
        %vm853 = vcmp.eq.f32.partialorder %v815, inf
        %v854 = vsel %vm853, %v815, %v852
        %vm855 = vcmp.eq.f32.partialorder %v815, 0.0
        %v856 = vand.u32 %v815, 2147483648
        %v857 = vsel %vm855, %v856, %v854
        %vm858 = vcmask 130048
        %v859 = vsel %vm858, %v822, 0.0
        %v860 = vsel %vm858, %v836, 0.0
        %v861 = vadd.f32 %v859, %v860
        %v862 = vsel %vm858, %v850, 0.0
        %v863 = vadd.f32 %v861, %v862
        %v864 = vsel %vm858, %v829, 0.0
        %v865 = vsel %vm858, %v843, 0.0
        %v866 = vadd.f32 %v864, %v865
        %v867 = vsel %vm858, %v857, 0.0
        %v868 = vadd.f32 %v866, %v867
        %869 = vst.msk [vmem:[%s203] sm:$0xff] %vm858, %v863
        %870 = vst.msk [vmem:[%s203 + $0x8] sm:$0xff] %vm858, %v868
        %s871 = sand.u32 %s82, 1
        %s872 = scalar_lea.sflag [#allocation4], %s871
        %s873 = sand.u32 %s82, 1
        %s874 = smul.addr %s873, 16
        %s875 = scalar_lea.vmem [#allocation7], %s874
        // Predicated region
        $region37: #{tpu_custom_call.1} parent=27 // pred_check
          %p876 = pneg %p92
        $region38: #{tpu_custom_call.1} parent=27 // pred_check_branch
          %878 = sbr.rel (%p876) target = $region40
        $region39: #{tpu_custom_call.1} parent=27 // pred_region
          %s880 = ssub.s32 256, 256
          %881 = vsyncadd %s872, %s880
          %s882 = smul.addr %s22, 2
          %s883 = smul.addr %s882, 128
          %s884 = scalar_lea.hbm %s2, %s883
          %s885 = sshll.u32 %s875, 4
          %s886 = int_to_ptr.vmem [resolvable:$true] %s885
          %891 = dma.vmem_to_hbm [thread:$0]  %s886, 256, %s884, %s872, 128, 128, 8
        $region40: #{tpu_custom_call.1} parent=27 // pred_fallthru
          _
      $region28: #{tpu_custom_call.1} parent=5 // pred_fallthru
        _
      %p892 = scmp.le.s32.totalorder 2, %s17
      // Predicated region
      $region41: #{tpu_custom_call.1} parent=5 // pred_check
        %p893 = pneg %p892
      $region42: #{tpu_custom_call.1} parent=5 // pred_check_branch
        %895 = sbr.rel (%p893) target = $region44
      $region43: #{tpu_custom_call.1} parent=5 // pred_region
        %s896 = ssub.s32 %s17, 2
        // Predicated region
        $region45: #{tpu_custom_call.1} parent=43 // pred_check
          %p897 = pneg %p98
        $region46: #{tpu_custom_call.1} parent=43 // pred_check_branch
          %899 = sbr.rel (%p897) target = $region48
        $region47: #{tpu_custom_call.1} parent=43 // pred_region
          %s900 = sand.u32 %s83, 1
          %s901 = scalar_lea.sflag [#allocation4], %s900
          %s902 = sand.u32 %s83, 1
          %s903 = smul.addr %s902, 16
          %s904 = scalar_lea.vmem [#allocation7], %s903
          %905 = dma.done %s901, 256
        $region48: #{tpu_custom_call.1} parent=43 // pred_fallthru
          _
      $region44: #{tpu_custom_call.1} parent=5 // pred_fallthru
        _
    $region6: #{tpu_custom_call.1} parent=1 // loop_footer
      %s21 = sadd.s32 1, %s17
    $region7: #{tpu_custom_call.1} parent=1 // loop_footer_branch
      %16 = sbr.rel target = $region3
    $region8: #{tpu_custom_call.1} parent=1 // loop_exit
      _
    %906 = vsyncpa [#allocation3], 1
    %s907 = scalar_lea.sflag [#allocation3], 1
    %908 = vsyncpa %s907, 1
    %909 = vsyncpa [#allocation6], 1
    %s910 = scalar_lea.sflag [#allocation6], 1
    %911 = vsyncpa %s910, 1
    %912 = vsyncpa [#allocation4], 1
    %s913 = scalar_lea.sflag [#allocation4], 1
    %914 = vsyncpa %s913, 1

</llo_original>
